<compile_context>
chip_gen: v5e
topology: v5e:2x2
jax: 0.10.0
libtpu: 0.0.40
codegen_flags: <defaults>
</compile_context>

<pallas_src>
import functools

import jax
import jax.numpy as jnp
from jax.experimental import pallas as pl
from jax.experimental.pallas import tpu as pltpu


def _stem_kernel(p_ref, w_ref, shift_ref, o_ref):
    # p_ref:     (TMr, Kb)  bf16  packed im2col patches, pre-ReLU (zero padding is ReLU-safe)
    # w_ref:     (Kb,  L)   bf16  block-diagonal conv weight with BN scale folded in
    # shift_ref: (1,   L)   f32   BN shift (beta - mean*scale), lane-tiled
    # o_ref:     (TMr, L)   f32
    p = jnp.maximum(p_ref[...], 0.0)                                  # ReLU (VPU)
    y = jnp.dot(p, w_ref[...], preferred_element_type=jnp.float32)    # conv as matmul (MXU)
    o_ref[...] = y + shift_ref[...]                                   # BatchNorm shift (VPU)


def _round_up(x, m):
    return ((x + m - 1) // m) * m


@functools.partial(jax.jit, static_argnames=("channels",))
def stem_forward(x_nchw, w_oihw, bn_gamma, bn_beta, bn_mean, bn_var, *, channels):
    """Runs Stem.forward. x_nchw: (N, 3, H, W) float32 -> (N, channels, Ho, Wo) float32."""
    eps = 1e-5
    N, Cin, H, W = x_nchw.shape
    KH = KW = 3
    stride = 2
    Ho = (H + 2 - KH) // stride + 1
    Wo = (W + 2 - KW) // stride + 1
    Cout = channels
    K = KH * KW * Cin
    M = N * Ho * Wo

    # ---- glue: layout conversion + im2col (pure data movement, stays in XLA) ----
    x_nhwc = jnp.transpose(x_nchw, (0, 2, 3, 1))                      # (N, H, W, Cin)
    x_pad = jnp.pad(x_nhwc, ((0, 0), (1, 1), (1, 1), (0, 0)))         # zero pad
    taps = []
    for kh in range(KH):
        for kw in range(KW):
            taps.append(x_pad[:, kh:kh + stride * Ho:stride,
                              kw:kw + stride * Wo:stride, :])         # (N, Ho, Wo, Cin)
    patches = jnp.concatenate(taps, axis=-1).reshape(M, K)            # (kh, kw, cin) ordering
    patches = patches.astype(jnp.bfloat16)                            # halve the dominant stream

    # conv weight (Cout, Cin, KH, KW) -> (KH, KW, Cin, Cout) -> (K, Cout); fold BN scale (f32)
    scale = bn_gamma / jnp.sqrt(bn_var + eps)                         # (Cout,)
    shift = (bn_beta - bn_mean * scale).astype(jnp.float32)           # (Cout,)
    w_mat = jnp.transpose(w_oihw, (2, 3, 1, 0)).reshape(K, Cout) * scale[None, :]

    # ---- lane-dense packing: PACK output rows per 128-lane output row ----
    if Cout < 128 and 128 % Cout == 0 and M % (128 // Cout) == 0:
        PACK = 128 // Cout
    else:
        PACK = 1
    Kb = PACK * K                                                     # packed contraction dim
    L = PACK * Cout                                                   # packed lane dim
    Mg = M // PACK                                                    # packed row count

    p_big = patches.reshape(Mg, Kb)                                   # free row-major reshape
    if PACK > 1:
        eye = jnp.eye(PACK, dtype=w_mat.dtype)
        # w_big[r*K + k, s*Cout + c] = w_mat[k, c] if r == s else 0
        w_big = jnp.einsum("rs,kc->rksc", eye, w_mat).reshape(Kb, L)
        shift_big = jnp.tile(shift.reshape(1, Cout), (1, PACK))       # (1, L)
    else:
        w_big = w_mat
        shift_big = shift.reshape(1, Cout)
    w_big = w_big.astype(jnp.bfloat16)
    shift_big = shift_big.astype(jnp.float32)

    # ---- tiling over the packed row dimension ----
    # >=256 lhs rows per step keeps the v6e/v7x MXU fed; per-step VMEM is well under 2 MiB
    # (bf16 lhs tile + f32 out tile, double-buffered) so it fits every generation's budget.
    TMr = min(1024, _round_up(Mg, 8))
    grid = (pl.cdiv(Mg, TMr),)

    out_dense = pl.pallas_call(
        _stem_kernel,
        out_shape=jax.ShapeDtypeStruct((Mg, L), jnp.float32),
        grid=grid,
        in_specs=[
            pl.BlockSpec((TMr, Kb), lambda i: (i, 0)),                # streamed patch tiles
            pl.BlockSpec((Kb, L), lambda i: (0, 0)),                  # resident weight
            pl.BlockSpec((1, L), lambda i: (0, 0)),                   # resident BN shift
        ],
        out_specs=pl.BlockSpec((TMr, L), lambda i: (i, 0)),
        compiler_params=pltpu.CompilerParams(
            dimension_semantics=("parallel",),                        # shard across v7x TCs
            vmem_limit_bytes=32 * 1024 * 1024,
        ),
    )(p_big, w_big, shift_big)

    # (Mg, L) rows are PACK consecutive (row, Cout) output rows, row-major -> free reshape back.
    out = out_dense.reshape(N, Ho, Wo, Cout)
    return jnp.transpose(out, (0, 3, 1, 2))                           # back to NCHW


def _reference(x_nchw, w_oihw, bn_gamma, bn_beta, bn_mean, bn_var):
    eps = 1e-5
    x = jnp.maximum(x_nchw, 0.0)
    y = jax.lax.conv_general_dilated(
        x, w_oihw, window_strides=(2, 2), padding=((1, 1), (1, 1)),
        dimension_numbers=("NCHW", "OIHW", "NCHW"))
    scale = bn_gamma / jnp.sqrt(bn_var + eps)
    shift = bn_beta - bn_mean * scale
    return y * scale[None, :, None, None] + shift[None, :, None, None]


if __name__ == "__main__":
    key = jax.random.PRNGKey(0)
    k_x, k_w, k_g, k_b, k_m, k_v = jax.random.split(key, 6)

    N, Cin, H, W = 2, 3, 16, 16
    channels = 32

    x = jax.random.normal(k_x, (N, Cin, H, W), dtype=jnp.float32)
    w = jax.random.normal(k_w, (channels, Cin, 3, 3), dtype=jnp.float32) * 0.1
    bn_gamma = 1.0 + 0.1 * jax.random.normal(k_g, (channels,), dtype=jnp.float32)
    bn_beta = 0.1 * jax.random.normal(k_b, (channels,), dtype=jnp.float32)
    bn_mean = 0.05 * jax.random.normal(k_m, (channels,), dtype=jnp.float32)
    bn_var = jnp.abs(1.0 + 0.1 * jax.random.normal(k_v, (channels,), dtype=jnp.float32))

    out = stem_forward(x, w, bn_gamma, bn_beta, bn_mean, bn_var, channels=channels)
    out = jax.block_until_ready(out)

    ref = _reference(x, w, bn_gamma, bn_beta, bn_mean, bn_var)
    assert out.shape == (N, channels, H // 2, W // 2), out.shape
    # bf16 matmul operands (f32 accumulation) -> loosened tolerance vs the f32 reference.
    err = float(jnp.max(jnp.abs(out - ref)))
    assert jnp.allclose(out, ref, atol=5e-2, rtol=5e-2), err

    print("KERNEL_OK")
</pallas_src>

<mosaic_0001>
module attributes {stable_mosaic.version = 11 : i64} {
  func.func @_stem_kernel(%arg0: i32, %arg1: memref<32x108xbf16, #tpu.memory_space<vmem>>, %arg2: memref<108x128xbf16, #tpu.memory_space<vmem>>, %arg3: memref<1x128xf32, #tpu.memory_space<vmem>>, %arg4: memref<32x128xf32, #tpu.memory_space<vmem>>) attributes {dimension_semantics = [#tpu.dimension_semantics<parallel>], iteration_bounds = array<i64: 1>, scalar_prefetch = 0 : i64, scratch_operands = 0 : i64, tpu.core_type = #tpu.core_type<tc>, window_params = [{transform_indices = @transform_0, window_bounds = array<i64: 32, 108>}, {pipeline_mode = #tpu.pipeline_mode<synchronous>, transform_indices = @transform_1, window_bounds = array<i64: 108, 128>}, {pipeline_mode = #tpu.pipeline_mode<synchronous>, transform_indices = @transform_2, window_bounds = array<i64: 1, 128>}, {transform_indices = @transform_3, window_bounds = array<i64: 32, 128>}]} {
    %c0 = arith.constant 0 : index
    %c0_0 = arith.constant 0 : index
    %0 = vector.load %arg1[%c0, %c0_0] : memref<32x108xbf16, #tpu.memory_space<vmem>>, vector<32x108xbf16>
    %cst = arith.constant 0.000000e+00 : bf16
    %1 = vector.broadcast %cst : bf16 to vector<32x108xbf16>
    %2 = arith.maximumf %0, %1 : vector<32x108xbf16>
    %c0_1 = arith.constant 0 : index
    %c0_2 = arith.constant 0 : index
    %3 = vector.load %arg2[%c0_1, %c0_2] : memref<108x128xbf16, #tpu.memory_space<vmem>>, vector<108x128xbf16>
    %cst_3 = arith.constant dense<0.000000e+00> : vector<32x128xf32>
    %4 = tpu.matmul %2, %3, %cst_3 {dimension_numbers = #tpu.dot_dimension_numbers<[1], [0], [0], [1], [0, 0, 1, 1], [], []>} : vector<32x108xbf16>, vector<108x128xbf16>, vector<32x128xf32> -> vector<32x128xf32>
    %c0_4 = arith.constant 0 : index
    %c0_5 = arith.constant 0 : index
    %5 = vector.load %arg3[%c0_4, %c0_5] : memref<1x128xf32, #tpu.memory_space<vmem>>, vector<1x128xf32>
    %6 = vector.broadcast %5 : vector<1x128xf32> to vector<32x128xf32>
    %7 = arith.addf %4, %6 : vector<32x128xf32>
    %c0_6 = arith.constant 0 : index
    %c0_7 = arith.constant 0 : index
    %8 = vector.load %arg4[%c0_6, %c0_7] : memref<32x128xf32, #tpu.memory_space<vmem>>, vector<32x128xf32>
    tpu.vector_store %arg4[%c0_6, %c0_7], %7 {strides = array<i32>} : memref<32x128xf32, #tpu.memory_space<vmem>>, vector<32x128xf32>,
    return
  }
  func.func @transform_0(%arg0: i32) -> (i32, i32) {
    %c0_i32 = arith.constant 0 : i32
    %c0_i32_0 = arith.constant 0 : i32
    return %arg0, %c0_i32 : i32, i32
  }
  func.func @transform_1(%arg0: i32) -> (i32, i32) {
    %c0_i32 = arith.constant 0 : i32
    %c0_i32_0 = arith.constant 0 : i32
    %c0_i32_1 = arith.constant 0 : i32
    return %c0_i32, %c0_i32_0 : i32, i32
  }
  func.func @transform_2(%arg0: i32) -> (i32, i32) {
    %c0_i32 = arith.constant 0 : i32
    %c0_i32_0 = arith.constant 0 : i32
    %c0_i32_1 = arith.constant 0 : i32
    return %c0_i32, %c0_i32_0 : i32, i32
  }
  func.func @transform_3(%arg0: i32) -> (i32, i32) {
    %c0_i32 = arith.constant 0 : i32
    %c0_i32_0 = arith.constant 0 : i32
    return %arg0, %c0_i32 : i32, i32
  }
}

</mosaic_0001>

<llo_original>
// kernel: stem_forward.1
$region0: #{stem_forward.1}
  #allocation0 [shape = 'u32[]', space=smem, size = 0x4, offset = 0x4, fixed_abs, tag = 'smem constant byte address 0x4 - core index']
  #allocation1 [shape = 'u32[72,128]{1,0:T(1,128)}', space=vmem, size = 0x9000, scoped, tag = 'internal scratch']
  %s0 = inlined_call_operand.vmem [shape: bf16[32,108], index: 0, kind: input, shape index: {}]
  %s1 = inlined_call_operand.vmem [shape: bf16[108,128], index: 1, kind: input, shape index: {}]
  %s2 = inlined_call_operand.vmem [shape: f32[1,128], index: 2, kind: input, shape index: {}]
  %s3 = inlined_call_operand.vmem [shape: f32[32,128], index: 3, kind: output, shape index: {}]
  %s4 = sld [smem:[#allocation0]]
  $region22: #{stem_forward.1} parent=0
    _
  %s6 = ssub.s32 1, %s4
  %s7 = scalar_select 0, %s6, %s4
  // Predicated region
  $region2: #{stem_forward.1} parent=0 // pred_check
    _
  $region3: #{stem_forward.1} parent=0 // pred_check_branch
    %9 = sbr.rel (0) target = $region5
  $region4: #{stem_forward.1} parent=0 // pred_region
    _
  $region5: #{stem_forward.1} parent=0 // pred_fallthru
    _
  // Predicated region
  $region6: #{stem_forward.1} parent=0 // pred_check
    _
  $region7: #{stem_forward.1} parent=0 // pred_check_branch
    %11 = sbr.rel (0) target = $region9
  $region8: #{stem_forward.1} parent=0 // pred_region
    _
  $region9: #{stem_forward.1} parent=0 // pred_fallthru
    _
  // Predicated region
  $region10: #{stem_forward.1} parent=0 // pred_check
    _
  $region11: #{stem_forward.1} parent=0 // pred_check_branch
    %13 = sbr.rel (0) target = $region13
  $region12: #{stem_forward.1} parent=0 // pred_region
    _
  $region13: #{stem_forward.1} parent=0 // pred_fallthru
    _
  %v15 = vld [vmem:[%s0] sm:$0xf]
  %v16 = vld [vmem:[%s0 + $0x4] sm:$0xf]
  %v17 = vld [vmem:[%s0 + $0x8] sm:$0xf]
  %v18 = vld [vmem:[%s0 + $0xc] sm:$0xf]
  %v19 = vunpack.c.l.bf16 %v15
  %v20 = vunpack.c.l.bf16 %v16
  %v21 = vunpack.c.l.bf16 %v17
  %v22 = vunpack.c.l.bf16 %v18
  %v23 = vmax.f32 %v19, 0.0
  %v24 = vmax.f32 %v20, 0.0
  %v25 = vmax.f32 %v21, 0.0
  %v26 = vmax.f32 %v22, 0.0
  %v27 = vpack.c.bf16 %v24, %v23
  %v28 = vpack.c.bf16 %v26, %v25
  %v29 = vld [vmem:[%s1] sm:$0xf]
  %v30 = vld [vmem:[%s1 + $0x4] sm:$0xf]
  %v31 = vld [vmem:[%s1 + $0x8] sm:$0xf]
  %v32 = vld [vmem:[%s1 + $0xc] sm:$0xf]
  %v33 = vld [vmem:[%s1 + $0x10] sm:$0xf]
  %v34 = vld [vmem:[%s1 + $0x14] sm:$0xf]
  %v35 = vld [vmem:[%s1 + $0x18] sm:$0xf]
  %v36 = vld [vmem:[%s1 + $0x1c] sm:$0xf]
  %v37 = vld [vmem:[%s1 + $0x20] sm:$0xf]
  %v38 = vld [vmem:[%s1 + $0x24] sm:$0xf]
  %v39 = vld [vmem:[%s1 + $0x28] sm:$0xf]
  %v40 = vld [vmem:[%s1 + $0x2c] sm:$0xf]
  %v41 = vld [vmem:[%s1 + $0x30] sm:$0xf]
  %v42 = vld [vmem:[%s1 + $0x34] sm:$0x3]
  %v43 = vld [vmem:[%s2] sm:$0x1]
  %v45 = vperm.slane %v43, 0
  %v61 = vunpack.c.l.b16 %v29
  %v62 = vunpack.c.l.b16 %v30
  %v63 = vunpack.c.l.b16 %v31
  %v64 = vunpack.c.l.b16 %v32
  %v65 = vunpack.c.l.b16 %v33
  %v66 = vunpack.c.l.b16 %v34
  %v67 = vunpack.c.l.b16 %v35
  %v68 = vunpack.c.l.b16 %v36
  %v69 = vunpack.c.l.b16 %v37
  %v70 = vunpack.c.l.b16 %v38
  %v71 = vunpack.c.l.b16 %v39
  %v72 = vunpack.c.l.b16 %v40
  %v73 = vunpack.c.l.b16 %v41
  %v74 = vunpack.c.l.b16 %v42
  %v75 = vpack.c.b16 %v62, %v61
  %v76 = vpack.c.b16 %v64, %v63
  %v77 = vpack.c.b16 %v66, %v65
  %v78 = vpack.c.b16 %v68, %v67
  %v79 = vpack.c.b16 %v70, %v69
  %v80 = vpack.c.b16 %v72, %v71
  %v81 = vpack.c.b16 %v74, %v73
  %vm88 = vcmask 883712
  %v90 = vsel %vm88, %v27, 0
  %v93 = vsel %vm88, %v28, 0
  %vm95 = vcmask 1045504
  %v97 = vsel %vm95, %v81, 0
  %99 = vmatpush.bf16.msra.mxu0 0
  %100 = vmatpush.bf16.msra.mxu0 %v97
  %101 = vmatpush.bf16.msra.mxu0 %v80
  %102 = vmatpush.bf16.msra.mxu0 %v79
  %103 = vmatpush.bf16.msra.mxu0 %v78
  %104 = vmatpush.bf16.msra.mxu0 %v77
  %105 = vmatpush.bf16.msra.mxu0 %v76
  %106 = vmatpush.bf16.msra.mxu0 %v75
  %107 = vmatmul.bf16.gmra.mxu0 %v90
  %v108 = vpop.f32.mrf.mxu0
  %v109 = vadd.f32 %v45, %v108
  %v110 = vpop.f32.mrf.mxu0
  %v111 = vadd.f32 %v45, %v110
  %112 = vmatmul.bf16.gmra.mxu0 %v93
  %v113 = vpop.f32.mrf.mxu0
  %v114 = vadd.f32 %v45, %v113
  %v115 = vpop.f32.mrf.mxu0
  %v116 = vadd.f32 %v45, %v115
  %117 = vdwg.mxu0
  %118 = vst [vmem:[%s3] sm:$0xff] %v109
  %119 = vst [vmem:[%s3 + $0x8] sm:$0xff] %v111
  %120 = vst [vmem:[%s3 + $0x10] sm:$0xff] %v114
  %121 = vst [vmem:[%s3 + $0x18] sm:$0xff] %v116
  // Predicated region
  $region14: #{stem_forward.1} parent=0 // pred_check
    _
  $region15: #{stem_forward.1} parent=0 // pred_check_branch
    %123 = sbr.rel (0) target = $region17
  $region16: #{stem_forward.1} parent=0 // pred_region
    _
  $region17: #{stem_forward.1} parent=0 // pred_fallthru
    _
  // Predicated region
  $region18: #{stem_forward.1} parent=0 // pred_check
    _
  $region19: #{stem_forward.1} parent=0 // pred_check_branch
    %125 = sbr.rel (0) target = $region21
  $region20: #{stem_forward.1} parent=0 // pred_region
    _
  $region21: #{stem_forward.1} parent=0 // pred_fallthru
    _

</llo_original>
